<compile_context>
chip_gen: v6e
topology: v6e:2x2x1
jax: 0.10.0
libtpu: 0.0.40
codegen_flags: <defaults>
</compile_context>

<pallas_src>
import functools

import numpy as np
import jax
import jax.numpy as jnp
from jax.experimental import pallas as pl
from jax.experimental.pallas import tpu as pltpu

_LN_EPS = 1e-5  # PyTorch nn.LayerNorm default


# ----------------------------------------------------------------------------
# Pallas kernel: Linear -> LayerNorm -> ReLU -> Linear -> LayerNorm -> ReLU
#                -> Linear -> Sigmoid      (dropout is identity at inference)
# Everything is computed in the transposed [features, rows] layout.
# ----------------------------------------------------------------------------
def _layernorm_axis0(h, gamma_col, beta_col):
    """LayerNorm over the feature axis (axis 0 in the transposed layout)."""
    mu = jnp.mean(h, axis=0, keepdims=True)
    var = jnp.mean((h - mu) ** 2, axis=0, keepdims=True)
    return (h - mu) * jax.lax.rsqrt(var + _LN_EPS) * gamma_col + beta_col


def _mlp_kernel(xT_ref, w1T_ref, ln1_ref, w2T_ref, ln2_ref, w3b_ref, o_ref):
    # xT_ref : (input_dim, T)  bf16  -- streamed per row-tile (rows on lanes)
    # w1T_ref: (H, input_dim)  bf16
    # ln1_ref: (H, 3)          f32   -- columns: [bias1 | gamma1 | beta1]
    # w2T_ref: (H2, H)         f32
    # ln2_ref: (H2, 3)         f32   -- columns: [bias2 | gamma2 | beta2]
    # w3b_ref: (H2, 2)         f32   -- col 0: w3, col 1: b3 (replicated)
    # o_ref  : (1, T)          f32   -- lane-dense sigmoid output
    xT = xT_ref[...]

    # Layer 1: Linear(input_dim -> H) + LayerNorm(H) + ReLU
    h = jnp.dot(w1T_ref[...], xT, preferred_element_type=jnp.float32)  # (H, T)
    ln1 = ln1_ref[...]
    h = h + ln1[:, 0:1]
    h = _layernorm_axis0(h, ln1[:, 1:2], ln1[:, 2:3])
    h = jnp.maximum(h, 0.0)
    # TODO(synk): training-mode Dropout not implemented (identity at inference).

    # Layer 2: Linear(H -> H//2) + LayerNorm(H//2) + ReLU
    h = jnp.dot(w2T_ref[...], h, preferred_element_type=jnp.float32)   # (H2, T)
    ln2 = ln2_ref[...]
    h = h + ln2[:, 0:1]
    h = _layernorm_axis0(h, ln2[:, 1:2], ln2[:, 2:3])
    h = jnp.maximum(h, 0.0)

    # Layer 3: Linear(H//2 -> 1) as a VPU multiply + sublane reduce so the
    # result is already a lane-dense row vector; then Sigmoid.
    w3b = w3b_ref[...]
    z = jnp.sum(h * w3b[:, 0:1], axis=0, keepdims=True) + w3b[0:1, 1:2]  # (1, T)
    o_ref[...] = jax.nn.sigmoid(z)


# ----------------------------------------------------------------------------
# Wrapper: packing, tiling, pallas_call
# ----------------------------------------------------------------------------
def _round_up(a, b):
    return ((a + b - 1) // b) * b


def _pack_params(params):
    """Transpose / pack raw parameters into the kernel's operand layout."""
    (w1, b1, g1, be1, w2, b2, g2, be2, w3, b3) = params
    w1T = jnp.asarray(w1).T.astype(jnp.bfloat16)                     # (H, d)
    ln1 = jnp.stack([b1, g1, be1], axis=1).astype(jnp.float32)       # (H, 3)
    w2T = jnp.asarray(w2).T.astype(jnp.float32)                      # (H2, H)
    ln2 = jnp.stack([b2, g2, be2], axis=1).astype(jnp.float32)       # (H2, 3)
    w3_col = jnp.asarray(w3).reshape(-1)
    b3_col = jnp.broadcast_to(jnp.asarray(b3).reshape(-1), w3_col.shape)
    w3b = jnp.stack([w3_col, b3_col], axis=1).astype(jnp.float32)    # (H2, 2)
    return w1T, ln1, w2T, ln2, w3b


@functools.partial(jax.jit, static_argnames=("tile_rows",))
def weights_predictor_mlp(feats, params, *, tile_rows=512):
    """Run the WeightsPredictor MLP on feats [n, input_dim]; returns [n, 1]."""
    n, d = feats.shape
    w1T, ln1, w2T, ln2, w3b = _pack_params(params)

    # Row tile: multiple of 128 (lane-dense output blocks), capped at
    # tile_rows, and chosen so the grid always has >= 2 steps (v7x megacore).
    tile_rows = max(128, _round_up(int(tile_rows), 128))
    tile = min(tile_rows, max(128, _round_up(pl.cdiv(n, 2), 128)))
    n_pad = max(_round_up(n, tile), 2 * tile)
    grid_len = n_pad // tile

    # Transposed, bf16, zero-padded input: [input_dim, n_pad].
    xT = jnp.pad(feats.astype(jnp.bfloat16).T, ((0, 0), (0, n_pad - n)))

    out = pl.pallas_call(
        _mlp_kernel,
        out_shape=jax.ShapeDtypeStruct((1, n_pad), jnp.float32),
        grid=(grid_len,),
        in_specs=[
            pl.BlockSpec((d, tile), lambda i: (0, i)),     # streamed x^T tile
            pl.BlockSpec(w1T.shape, lambda i: (0, 0)),     # resident weights
            pl.BlockSpec(ln1.shape, lambda i: (0, 0)),
            pl.BlockSpec(w2T.shape, lambda i: (0, 0)),
            pl.BlockSpec(ln2.shape, lambda i: (0, 0)),
            pl.BlockSpec(w3b.shape, lambda i: (0, 0)),
        ],
        out_specs=pl.BlockSpec((1, tile), lambda i: (0, i)),
        compiler_params=pltpu.CompilerParams(
            dimension_semantics=("parallel",)),
    )(xT, w1T, ln1, w2T, ln2, w3b)

    return out[0, :n][:, None]


# ----------------------------------------------------------------------------
# Full forward (matches PyTorch WeightsPredictor.forward)
# ----------------------------------------------------------------------------
def weights_predictor_forward(variable_features, variable_latents,
                              connection_mask, params):
    """Returns normalized weights [n_connected, 1].

    The row-wise MLP is evaluated on-device for ALL variable rows (jittable,
    no host sync gating the kernel); the dynamic-shape compaction to the
    connected rows only touches the tiny [n_variables] mask / output.
    """
    feats = jnp.concatenate(
        [jnp.asarray(variable_features, jnp.float32),
         jnp.asarray(variable_latents, jnp.float32)], axis=1)
    all_weights = weights_predictor_mlp(feats, params)          # [n_vars, 1]

    mask = jnp.asarray(connection_mask).reshape(-1) != 0
    connected = jnp.nonzero(mask)[0]   # dynamic shape -> glue outside the kernel
    if int(connected.shape[0]) == 0:
        return jnp.zeros((0, 1), jnp.float32)
    return all_weights[connected]


def denormalize_weights(normalized_weights, coeff_min=-100.0, coeff_max=100.0):
    """Map normalized weights back to the original coefficient range."""
    return coeff_min + normalized_weights * (coeff_max - coeff_min)


# ----------------------------------------------------------------------------
# Parameter construction (deterministic, PyTorch nn.Linear-style init)
# ----------------------------------------------------------------------------
def init_params(key, input_dim, hidden):
    h2 = hidden // 2
    ks = jax.random.split(key, 6)

    def linear(kw, kb, fan_in, fan_out):
        bound = 1.0 / np.sqrt(fan_in)
        w = jax.random.uniform(kw, (fan_in, fan_out), jnp.float32, -bound, bound)
        b = jax.random.uniform(kb, (fan_out,), jnp.float32, -bound, bound)
        return w, b

    w1, b1 = linear(ks[0], ks[1], input_dim, hidden)
    w2, b2 = linear(ks[2], ks[3], hidden, h2)
    w3, b3 = linear(ks[4], ks[5], h2, 1)
    g1, be1 = jnp.ones((hidden,), jnp.float32), jnp.zeros((hidden,), jnp.float32)
    g2, be2 = jnp.ones((h2,), jnp.float32), jnp.zeros((h2,), jnp.float32)
    return (w1, b1, g1, be1, w2, b2, g2, be2, w3, b3)


def _reference_mlp(x, params):
    """Pure-JAX f32 reference with the original module semantics."""
    (w1, b1, g1, be1, w2, b2, g2, be2, w3, b3) = params

    def ln(h, g, be):
        m = jnp.mean(h, axis=-1, keepdims=True)
        v = jnp.mean((h - m) ** 2, axis=-1, keepdims=True)
        return (h - m) * jax.lax.rsqrt(v + _LN_EPS) * g + be

    h = jnp.maximum(ln(x @ w1 + b1, g1, be1), 0.0)
    h = jnp.maximum(ln(h @ w2 + b2, g2, be2), 0.0)
    return jax.nn.sigmoid(h @ w3 + b3)


if __name__ == "__main__":
    # Small shapes consistent with the module: variable feature dim 32,
    # latent dim 16 (input_dim 48), predictor_hidden_dim 64, n_variables 16.
    hidden_dim, latent_dim, pred_hidden, n_vars = 32, 16, 64, 16
    input_dim = hidden_dim + latent_dim

    key = jax.random.PRNGKey(0)
    k_feat, k_lat, k_mask, k_par = jax.random.split(key, 4)

    variable_features = jax.random.normal(k_feat, (n_vars, hidden_dim), jnp.float32)
    variable_latents = jax.random.normal(k_lat, (n_vars, latent_dim), jnp.float32)
    connection_mask = (jax.random.uniform(k_mask, (n_vars, 1)) > 0.4).astype(jnp.float32)

    params = init_params(k_par, input_dim, pred_hidden)

    out = weights_predictor_forward(
        variable_features, variable_latents, connection_mask, params)
    out = jax.block_until_ready(out)

    # Check against the pure-JAX f32 reference on the connected rows.
    mask_np = np.asarray(connection_mask).reshape(-1)
    idx = np.flatnonzero(mask_np)
    ref_in = jnp.concatenate(
        [variable_features[idx], variable_latents[idx]], axis=1)
    ref = _reference_mlp(ref_in, params)
    # x / W1 are streamed as bf16 inside the kernel -> modest tolerance.
    np.testing.assert_allclose(np.asarray(out), np.asarray(ref),
                               rtol=1e-2, atol=1e-2)

    print("KERNEL_OK")
</pallas_src>

<mosaic_0001>
module attributes {stable_mosaic.version = 11 : i64} {
  func.func @_mlp_kernel(%arg0: i32, %arg1: memref<48x128xbf16, #tpu.memory_space<vmem>>, %arg2: memref<64x48xbf16, #tpu.memory_space<vmem>>, %arg3: memref<64x3xf32, #tpu.memory_space<vmem>>, %arg4: memref<32x64xf32, #tpu.memory_space<vmem>>, %arg5: memref<32x3xf32, #tpu.memory_space<vmem>>, %arg6: memref<32x2xf32, #tpu.memory_space<vmem>>, %arg7: memref<1x128xf32, #tpu.memory_space<vmem>>) attributes {dimension_semantics = [#tpu.dimension_semantics<parallel>], iteration_bounds = array<i64: 2>, scalar_prefetch = 0 : i64, scratch_operands = 0 : i64, tpu.core_type = #tpu.core_type<tc>, window_params = [{transform_indices = @transform_0, window_bounds = array<i64: 48, 128>}, {pipeline_mode = #tpu.pipeline_mode<synchronous>, transform_indices = @transform_1, window_bounds = array<i64: 64, 48>}, {pipeline_mode = #tpu.pipeline_mode<synchronous>, transform_indices = @transform_2, window_bounds = array<i64: 64, 3>}, {pipeline_mode = #tpu.pipeline_mode<synchronous>, transform_indices = @transform_3, window_bounds = array<i64: 32, 64>}, {pipeline_mode = #tpu.pipeline_mode<synchronous>, transform_indices = @transform_4, window_bounds = array<i64: 32, 3>}, {pipeline_mode = #tpu.pipeline_mode<synchronous>, transform_indices = @transform_5, window_bounds = array<i64: 32, 2>}, {transform_indices = @transform_6, window_bounds = array<i64: 1, 128>}]} {
    %c0 = arith.constant 0 : index
    %c0_0 = arith.constant 0 : index
    %0 = vector.load %arg1[%c0, %c0_0] : memref<48x128xbf16, #tpu.memory_space<vmem>>, vector<48x128xbf16>
    %c0_1 = arith.constant 0 : index
    %c0_2 = arith.constant 0 : index
    %1 = vector.load %arg2[%c0_1, %c0_2] : memref<64x48xbf16, #tpu.memory_space<vmem>>, vector<64x48xbf16>
    %cst = arith.constant dense<0.000000e+00> : vector<64x128xf32>
    %2 = tpu.matmul %1, %0, %cst {dimension_numbers = #tpu.dot_dimension_numbers<[1], [0], [0], [1], [0, 0, 1, 1], [], []>} : vector<64x48xbf16>, vector<48x128xbf16>, vector<64x128xf32> -> vector<64x128xf32>
    %c0_3 = arith.constant 0 : index
    %c0_4 = arith.constant 0 : index
    %3 = vector.load %arg3[%c0_3, %c0_4] : memref<64x3xf32, #tpu.memory_space<vmem>>, vector<64x3xf32>
    %4 = vector.extract_strided_slice %3 {offsets = [0, 0], sizes = [64, 1], strides = [1, 1]} : vector<64x3xf32> to vector<64x1xf32>
    %5 = vector.broadcast %4 : vector<64x1xf32> to vector<64x128xf32>
    %6 = arith.addf %2, %5 : vector<64x128xf32>
    %7 = vector.extract_strided_slice %3 {offsets = [0, 1], sizes = [64, 1], strides = [1, 1]} : vector<64x3xf32> to vector<64x1xf32>
    %8 = vector.extract_strided_slice %3 {offsets = [0, 2], sizes = [64, 1], strides = [1, 1]} : vector<64x3xf32> to vector<64x1xf32>
    %cst_5 = arith.constant dense<0.000000e+00> : vector<128xf32>
    %9 = vector.multi_reduction <add>, %6, %cst_5 [0] : vector<64x128xf32> to vector<128xf32>
    %10 = vector.shape_cast %9 : vector<128xf32> to vector<1x128xf32>
    %cst_6 = arith.constant 6.400000e+01 : f32
    %11 = vector.broadcast %cst_6 : f32 to vector<1x128xf32>
    %12 = arith.divf %10, %11 : vector<1x128xf32>
    %13 = vector.broadcast %12 : vector<1x128xf32> to vector<64x128xf32>
    %14 = arith.subf %6, %13 : vector<64x128xf32>
    %15 = arith.mulf %14, %14 : vector<64x128xf32>
    %cst_7 = arith.constant dense<0.000000e+00> : vector<128xf32>
    %16 = vector.multi_reduction <add>, %15, %cst_7 [0] : vector<64x128xf32> to vector<128xf32>
    %17 = vector.shape_cast %16 : vector<128xf32> to vector<1x128xf32>
    %cst_8 = arith.constant 6.400000e+01 : f32
    %18 = vector.broadcast %cst_8 : f32 to vector<1x128xf32>
    %19 = arith.divf %17, %18 : vector<1x128xf32>
    %20 = vector.broadcast %12 : vector<1x128xf32> to vector<64x128xf32>
    %21 = arith.subf %6, %20 : vector<64x128xf32>
    %cst_9 = arith.constant 9.99999974E-6 : f32
    %22 = vector.broadcast %cst_9 : f32 to vector<1x128xf32>
    %23 = arith.addf %19, %22 : vector<1x128xf32>
    %24 = math.rsqrt %23 : vector<1x128xf32>
    %25 = vector.broadcast %24 : vector<1x128xf32> to vector<64x128xf32>
    %26 = arith.mulf %21, %25 : vector<64x128xf32>
    %27 = vector.broadcast %7 : vector<64x1xf32> to vector<64x128xf32>
    %28 = arith.mulf %26, %27 : vector<64x128xf32>
    %29 = vector.broadcast %8 : vector<64x1xf32> to vector<64x128xf32>
    %30 = arith.addf %28, %29 : vector<64x128xf32>
    %cst_10 = arith.constant 0.000000e+00 : f32
    %31 = vector.broadcast %cst_10 : f32 to vector<64x128xf32>
    %32 = arith.maximumf %30, %31 : vector<64x128xf32>
    %c0_11 = arith.constant 0 : index
    %c0_12 = arith.constant 0 : index
    %33 = vector.load %arg4[%c0_11, %c0_12] : memref<32x64xf32, #tpu.memory_space<vmem>>, vector<32x64xf32>
    %cst_13 = arith.constant dense<0.000000e+00> : vector<32x128xf32>
    %34 = tpu.matmul %33, %32, %cst_13 {dimension_numbers = #tpu.dot_dimension_numbers<[1], [0], [0], [1], [0, 0, 1, 1], [], []>} : vector<32x64xf32>, vector<64x128xf32>, vector<32x128xf32> -> vector<32x128xf32>
    %c0_14 = arith.constant 0 : index
    %c0_15 = arith.constant 0 : index
    %35 = vector.load %arg5[%c0_14, %c0_15] : memref<32x3xf32, #tpu.memory_space<vmem>>, vector<32x3xf32>
    %36 = vector.extract_strided_slice %35 {offsets = [0, 0], sizes = [32, 1], strides = [1, 1]} : vector<32x3xf32> to vector<32x1xf32>
    %37 = vector.broadcast %36 : vector<32x1xf32> to vector<32x128xf32>
    %38 = arith.addf %34, %37 : vector<32x128xf32>
    %39 = vector.extract_strided_slice %35 {offsets = [0, 1], sizes = [32, 1], strides = [1, 1]} : vector<32x3xf32> to vector<32x1xf32>
    %40 = vector.extract_strided_slice %35 {offsets = [0, 2], sizes = [32, 1], strides = [1, 1]} : vector<32x3xf32> to vector<32x1xf32>
    %cst_16 = arith.constant dense<0.000000e+00> : vector<128xf32>
    %41 = vector.multi_reduction <add>, %38, %cst_16 [0] : vector<32x128xf32> to vector<128xf32>
    %42 = vector.shape_cast %41 : vector<128xf32> to vector<1x128xf32>
    %cst_17 = arith.constant 3.200000e+01 : f32
    %43 = vector.broadcast %cst_17 : f32 to vector<1x128xf32>
    %44 = arith.divf %42, %43 : vector<1x128xf32>
    %45 = vector.broadcast %44 : vector<1x128xf32> to vector<32x128xf32>
    %46 = arith.subf %38, %45 : vector<32x128xf32>
    %47 = arith.mulf %46, %46 : vector<32x128xf32>
    %cst_18 = arith.constant dense<0.000000e+00> : vector<128xf32>
    %48 = vector.multi_reduction <add>, %47, %cst_18 [0] : vector<32x128xf32> to vector<128xf32>
    %49 = vector.shape_cast %48 : vector<128xf32> to vector<1x128xf32>
    %cst_19 = arith.constant 3.200000e+01 : f32
    %50 = vector.broadcast %cst_19 : f32 to vector<1x128xf32>
    %51 = arith.divf %49, %50 : vector<1x128xf32>
    %52 = vector.broadcast %44 : vector<1x128xf32> to vector<32x128xf32>
    %53 = arith.subf %38, %52 : vector<32x128xf32>
    %cst_20 = arith.constant 9.99999974E-6 : f32
    %54 = vector.broadcast %cst_20 : f32 to vector<1x128xf32>
    %55 = arith.addf %51, %54 : vector<1x128xf32>
    %56 = math.rsqrt %55 : vector<1x128xf32>
    %57 = vector.broadcast %56 : vector<1x128xf32> to vector<32x128xf32>
    %58 = arith.mulf %53, %57 : vector<32x128xf32>
    %59 = vector.broadcast %39 : vector<32x1xf32> to vector<32x128xf32>
    %60 = arith.mulf %58, %59 : vector<32x128xf32>
    %61 = vector.broadcast %40 : vector<32x1xf32> to vector<32x128xf32>
    %62 = arith.addf %60, %61 : vector<32x128xf32>
    %cst_21 = arith.constant 0.000000e+00 : f32
    %63 = vector.broadcast %cst_21 : f32 to vector<32x128xf32>
    %64 = arith.maximumf %62, %63 : vector<32x128xf32>
    %c0_22 = arith.constant 0 : index
    %c0_23 = arith.constant 0 : index
    %65 = vector.load %arg6[%c0_22, %c0_23] : memref<32x2xf32, #tpu.memory_space<vmem>>, vector<32x2xf32>
    %66 = vector.extract_strided_slice %65 {offsets = [0, 0], sizes = [32, 1], strides = [1, 1]} : vector<32x2xf32> to vector<32x1xf32>
    %67 = vector.broadcast %66 : vector<32x1xf32> to vector<32x128xf32>
    %68 = arith.mulf %64, %67 : vector<32x128xf32>
    %cst_24 = arith.constant dense<0.000000e+00> : vector<128xf32>
    %69 = vector.multi_reduction <add>, %68, %cst_24 [0] : vector<32x128xf32> to vector<128xf32>
    %70 = vector.shape_cast %69 : vector<128xf32> to vector<1x128xf32>
    %71 = vector.extract_strided_slice %65 {offsets = [0, 1], sizes = [1, 1], strides = [1, 1]} : vector<32x2xf32> to vector<1x1xf32>
    %72 = vector.broadcast %71 : vector<1x1xf32> to vector<1x128xf32>
    %73 = arith.addf %70, %72 : vector<1x128xf32>
    %74 = arith.negf %73 : vector<1x128xf32>
    %75 = math.exp %74 : vector<1x128xf32>
    %cst_25 = arith.constant 1.000000e+00 : f32
    %76 = vector.broadcast %cst_25 : f32 to vector<1x128xf32>
    %77 = arith.addf %76, %75 : vector<1x128xf32>
    %78 = arith.divf %76, %77 : vector<1x128xf32>
    %c0_26 = arith.constant 0 : index
    %c0_27 = arith.constant 0 : index
    %79 = vector.load %arg7[%c0_26, %c0_27] : memref<1x128xf32, #tpu.memory_space<vmem>>, vector<1x128xf32>
    tpu.vector_store %arg7[%c0_26, %c0_27], %78 {strides = array<i32>} : memref<1x128xf32, #tpu.memory_space<vmem>>, vector<1x128xf32>,
    return
  }
  func.func @transform_0(%arg0: i32) -> (i32, i32) {
    %c0_i32 = arith.constant 0 : i32
    %c0_i32_0 = arith.constant 0 : i32
    return %c0_i32, %arg0 : i32, i32
  }
  func.func @transform_1(%arg0: i32) -> (i32, i32) {
    %c0_i32 = arith.constant 0 : i32
    %c0_i32_0 = arith.constant 0 : i32
    %c0_i32_1 = arith.constant 0 : i32
    return %c0_i32, %c0_i32_0 : i32, i32
  }
  func.func @transform_2(%arg0: i32) -> (i32, i32) {
    %c0_i32 = arith.constant 0 : i32
    %c0_i32_0 = arith.constant 0 : i32
    %c0_i32_1 = arith.constant 0 : i32
    return %c0_i32, %c0_i32_0 : i32, i32
  }
  func.func @transform_3(%arg0: i32) -> (i32, i32) {
    %c0_i32 = arith.constant 0 : i32
    %c0_i32_0 = arith.constant 0 : i32
    %c0_i32_1 = arith.constant 0 : i32
    return %c0_i32, %c0_i32_0 : i32, i32
  }
  func.func @transform_4(%arg0: i32) -> (i32, i32) {
    %c0_i32 = arith.constant 0 : i32
    %c0_i32_0 = arith.constant 0 : i32
    %c0_i32_1 = arith.constant 0 : i32
    return %c0_i32, %c0_i32_0 : i32, i32
  }
  func.func @transform_5(%arg0: i32) -> (i32, i32) {
    %c0_i32 = arith.constant 0 : i32
    %c0_i32_0 = arith.constant 0 : i32
    %c0_i32_1 = arith.constant 0 : i32
    return %c0_i32, %c0_i32_0 : i32, i32
  }
  func.func @transform_6(%arg0: i32) -> (i32, i32) {
    %c0_i32 = arith.constant 0 : i32
    %c0_i32_0 = arith.constant 0 : i32
    return %c0_i32, %arg0 : i32, i32
  }
}

</mosaic_0001>

<llo_original>
// kernel: weights_predictor_mlp.1
$region0: #{weights_predictor_mlp.1}
  #allocation0 [shape = 'u32[]', space=smem, size = 0x4, offset = 0x4, fixed_abs, tag = 'smem constant byte address 0x4 - core index']
  #allocation1 [shape = 'u32[144,128]{1,0:T(1,128)}', space=vmem, size = 0x12000, scoped, tag = 'internal scratch']
  %s0 = inlined_call_operand.vmem [shape: bf16[48,256], index: 0, kind: input, shape index: {}]
  %s1 = inlined_call_operand.vmem [shape: bf16[64,48], index: 1, kind: input, shape index: {}]
  %s2 = inlined_call_operand.vmem [shape: f32[64,3], index: 2, kind: input, shape index: {}]
  %s3 = inlined_call_operand.vmem [shape: f32[32,64], index: 3, kind: input, shape index: {}]
  %s4 = inlined_call_operand.vmem [shape: f32[32,3], index: 4, kind: input, shape index: {}]
  %s5 = inlined_call_operand.vmem [shape: f32[32,2], index: 5, kind: input, shape index: {}]
  %s6 = inlined_call_operand.vmem [shape: f32[1,256], index: 6, kind: output, shape index: {}]
  %s7 = sld [smem:[#allocation0]]
  $region98: #{weights_predictor_mlp.1} parent=0
    _
  %s9 = ssub.s32 1, %s7
  %s10 = scalar_select 0, %s9, %s7
  $region1: #{weights_predictor_mlp.1} parent=0
    #allocation2 [shape = 'u8[24576]{0}', space=vmem, size = 0x6000, scoped, tag = 'input window, operand 0']
    loop: start=0, step=1, limit=4
    $region2: #{weights_predictor_mlp.1} parent=1 // loop_pre_header
      _
    $region3: #{weights_predictor_mlp.1} parent=1 // loop_header
      %s12 = sphi 0, %s16
      %p13 = scmp.ge.s32.totalorder %s12, 4
      %s22 = sphi 0, %s24
      %s25 = sphi 0, %s22
      %s26 = sphi 0, %s25
      %s42 = sphi 0, %s26
      %s46 = sphi 0, %s46
      %s48 = sphi 0, %s46
      %s49 = sphi 0, %s48
      %s63 = sphi 0, %s49
      %s67 = sphi 0, %s67
      %s69 = sphi 0, %s67
      %s70 = sphi 0, %s69
      %s84 = sphi 0, %s70
      %s88 = sphi 0, %s88
      %s90 = sphi 0, %s88
      %s91 = sphi 0, %s90
      %s105 = sphi 0, %s91
      %s109 = sphi 0, %s109
      %s111 = sphi 0, %s109
      %s112 = sphi 0, %s111
      %s126 = sphi 0, %s112
      %s130 = sphi 0, %s130
      %s132 = sphi 0, %s130
      %s133 = sphi 0, %s132
      %s147 = sphi 0, %s133
      %s153 = sphi 0, %s155
      %s156 = sphi 0, %s153
      %s157 = sphi 0, %s156
      %s173 = sphi 0, %s157
    $region4: #{weights_predictor_mlp.1} parent=1 // loop_header_branch
      %15 = sbr.rel (%p13) target = $region8
    $region5: #{weights_predictor_mlp.1} parent=1 // loop_body
      %s17 = ssub.s32 %s12, 1
      %s18 = ssub.s32 %s12, 2
      %s19 = sadd.s32 %s12, 1
      %s20 = ssub.s32 %s12, %s19
      %p21 = scmp.eq.s32.totalorder %s20, 0
      %s23 = sadd.s32 %s22, 1
      %s24 = scalar_select %p21, %s22, %s23
      %p27 = pneg %p21
      %p28 = scmp.eq.s32.totalorder %s12, 1
      %p29 = por %p27, %p28
      %p30 = scmp.ne.s32.totalorder %s22, %s25
      %p31 = scmp.eq.s32.totalorder %s12, 0
      %p32 = por %p30, %p31
      %p33 = scmp.ne.s32.totalorder %s22, %s25
      %p34 = scmp.eq.s32.totalorder %s17, 1
      %p35 = por %p33, %p34
      %p36 = scmp.ne.s32.totalorder %s25, %s26
      %p37 = scmp.eq.s32.totalorder %s17, 0
      %p38 = por %p36, %p37
      %p39 = scmp.ne.s32.totalorder %s25, %s26
      %p40 = scmp.eq.s32.totalorder %s18, 1
      %p41 = por %p39, %p40
      %p43 = scmp.ne.s32.totalorder %s26, %s42
      %p44 = scmp.eq.s32.totalorder %s18, 0
      %p45 = por %p43, %p44
      %s47 = sadd.s32 %s46, 1
      %p50 = scmp.eq.s32.totalorder %s12, 1
      %p51 = scmp.ne.s32.totalorder %s46, %s48
      %p52 = scmp.eq.s32.totalorder %s12, 0
      %p53 = por %p51, %p52
      %p54 = scmp.ne.s32.totalorder %s46, %s48
      %p55 = scmp.eq.s32.totalorder %s17, 1
      %p56 = por %p54, %p55
      %p57 = scmp.ne.s32.totalorder %s48, %s49
      %p58 = scmp.eq.s32.totalorder %s17, 0
      %p59 = por %p57, %p58
      %p60 = scmp.ne.s32.totalorder %s48, %s49
      %p61 = scmp.eq.s32.totalorder %s18, 1
      %p62 = por %p60, %p61
      %p64 = scmp.ne.s32.totalorder %s49, %s63
      %p65 = scmp.eq.s32.totalorder %s18, 0
      %p66 = por %p64, %p65
      %s68 = sadd.s32 %s67, 1
      %p71 = scmp.eq.s32.totalorder %s12, 1
      %p72 = scmp.ne.s32.totalorder %s67, %s69
      %p73 = scmp.eq.s32.totalorder %s12, 0
      %p74 = por %p72, %p73
      %p75 = scmp.ne.s32.totalorder %s67, %s69
      %p76 = scmp.eq.s32.totalorder %s17, 1
      %p77 = por %p75, %p76
      %p78 = scmp.ne.s32.totalorder %s69, %s70
      %p79 = scmp.eq.s32.totalorder %s17, 0
      %p80 = por %p78, %p79
      %p81 = scmp.ne.s32.totalorder %s69, %s70
      %p82 = scmp.eq.s32.totalorder %s18, 1
      %p83 = por %p81, %p82
      %p85 = scmp.ne.s32.totalorder %s70, %s84
      %p86 = scmp.eq.s32.totalorder %s18, 0
      %p87 = por %p85, %p86
      %s89 = sadd.s32 %s88, 1
      %p92 = scmp.eq.s32.totalorder %s12, 1
      %p93 = scmp.ne.s32.totalorder %s88, %s90
      %p94 = scmp.eq.s32.totalorder %s12, 0
      %p95 = por %p93, %p94
      %p96 = scmp.ne.s32.totalorder %s88, %s90
      %p97 = scmp.eq.s32.totalorder %s17, 1
      %p98 = por %p96, %p97
      %p99 = scmp.ne.s32.totalorder %s90, %s91
      %p100 = scmp.eq.s32.totalorder %s17, 0
      %p101 = por %p99, %p100
      %p102 = scmp.ne.s32.totalorder %s90, %s91
      %p103 = scmp.eq.s32.totalorder %s18, 1
      %p104 = por %p102, %p103
      %p106 = scmp.ne.s32.totalorder %s91, %s105
      %p107 = scmp.eq.s32.totalorder %s18, 0
      %p108 = por %p106, %p107
      %s110 = sadd.s32 %s109, 1
      %p113 = scmp.eq.s32.totalorder %s12, 1
      %p114 = scmp.ne.s32.totalorder %s109, %s111
      %p115 = scmp.eq.s32.totalorder %s12, 0
      %p116 = por %p114, %p115
      %p117 = scmp.ne.s32.totalorder %s109, %s111
      %p118 = scmp.eq.s32.totalorder %s17, 1
      %p119 = por %p117, %p118
      %p120 = scmp.ne.s32.totalorder %s111, %s112
      %p121 = scmp.eq.s32.totalorder %s17, 0
      %p122 = por %p120, %p121
      %p123 = scmp.ne.s32.totalorder %s111, %s112
      %p124 = scmp.eq.s32.totalorder %s18, 1
      %p125 = por %p123, %p124
      %p127 = scmp.ne.s32.totalorder %s112, %s126
      %p128 = scmp.eq.s32.totalorder %s18, 0
      %p129 = por %p127, %p128
      %s131 = sadd.s32 %s130, 1
      %p134 = scmp.eq.s32.totalorder %s12, 1
      %p135 = scmp.ne.s32.totalorder %s130, %s132
      %p136 = scmp.eq.s32.totalorder %s12, 0
      %p137 = por %p135, %p136
      %p138 = scmp.ne.s32.totalorder %s130, %s132
      %p139 = scmp.eq.s32.totalorder %s17, 1
      %p140 = por %p138, %p139
      %p141 = scmp.ne.s32.totalorder %s132, %s133
      %p142 = scmp.eq.s32.totalorder %s17, 0
      %p143 = por %p141, %p142
      %p144 = scmp.ne.s32.totalorder %s132, %s133
      %p145 = scmp.eq.s32.totalorder %s18, 1
      %p146 = por %p144, %p145
      %p148 = scmp.ne.s32.totalorder %s133, %s147
      %p149 = scmp.eq.s32.totalorder %s18, 0
      %p150 = por %p148, %p149
      %s151 = ssub.s32 %s12, %s19
      %p152 = scmp.eq.s32.totalorder %s151, 0
      %s154 = sadd.s32 %s153, 1
      %s155 = scalar_select %p152, %s153, %s154
      %p158 = pneg %p152
      %p159 = scmp.eq.s32.totalorder %s12, 1
      %p160 = por %p158, %p159
      %p161 = scmp.ne.s32.totalorder %s153, %s156
      %p162 = scmp.eq.s32.totalorder %s12, 0
      %p163 = por %p161, %p162
      %p164 = scmp.ne.s32.totalorder %s153, %s156
      %p165 = scmp.eq.s32.totalorder %s17, 1
      %p166 = por %p164, %p165
      %p167 = scmp.ne.s32.totalorder %s156, %s157
      %p168 = scmp.eq.s32.totalorder %s17, 0
      %p169 = por %p167, %p168
      %p170 = scmp.ne.s32.totalorder %s156, %s157
      %p171 = scmp.eq.s32.totalorder %s18, 1
      %p172 = por %p170, %p171
      %p174 = scmp.ne.s32.totalorder %s157, %s173
      %p175 = scmp.eq.s32.totalorder %s18, 0
      %p176 = por %p174, %p175
      %p177 = scmp.le.s32.totalorder 1, %s12
      %p178 = scmp.lt.s32.totalorder %s12, 3
      %p179 = pnand %p177, %p178
      %p180 = pneg %p179
      // Predicated region
      $region9: #{weights_predictor_mlp.1} parent=5 // pred_check
        _
      $region10: #{weights_predictor_mlp.1} parent=5 // pred_check_branch
        %182 = sbr.rel (%p179) target = $region12
      $region11: #{weights_predictor_mlp.1} parent=5 // pred_region
        %s183 = ssub.s32 %s12, 1
        // Predicated region
        $region13: #{weights_predictor_mlp.1} parent=11 // pred_check
          %p184 = pneg %p59
        $region14: #{weights_predictor_mlp.1} parent=11 // pred_check_branch
          %186 = sbr.rel (%p184) target = $region16
        $region15: #{weights_predictor_mlp.1} parent=11 // pred_region
          _
        $region16: #{weights_predictor_mlp.1} parent=11 // pred_fallthru
          _
        // Predicated region
        $region17: #{weights_predictor_mlp.1} parent=11 // pred_check
          %p187 = pneg %p80
        $region18: #{weights_predictor_mlp.1} parent=11 // pred_check_branch
          %189 = sbr.rel (%p187) target = $region20
        $region19: #{weights_predictor_mlp.1} parent=11 // pred_region
          _
        $region20: #{weights_predictor_mlp.1} parent=11 // pred_fallthru
          _
        // Predicated region
        $region21: #{weights_predictor_mlp.1} parent=11 // pred_check
          %p190 = pneg %p101
        $region22: #{weights_predictor_mlp.1} parent=11 // pred_check_branch
          %192 = sbr.rel (%p190) target = $region24
        $region23: #{weights_predictor_mlp.1} parent=11 // pred_region
          _
        $region24: #{weights_predictor_mlp.1} parent=11 // pred_fallthru
          _
        // Predicated region
        $region25: #{weights_predictor_mlp.1} parent=11 // pred_check
          %p193 = pneg %p122
        $region26: #{weights_predictor_mlp.1} parent=11 // pred_check_branch
          %195 = sbr.rel (%p193) target = $region28
        $region27: #{weights_predictor_mlp.1} parent=11 // pred_region
          _
        $region28: #{weights_predictor_mlp.1} parent=11 // pred_fallthru
          _
        // Predicated region
        $region29: #{weights_predictor_mlp.1} parent=11 // pred_check
          %p196 = pneg %p143
        $region30: #{weights_predictor_mlp.1} parent=11 // pred_check_branch
          %198 = sbr.rel (%p196) target = $region32
        $region31: #{weights_predictor_mlp.1} parent=11 // pred_region
          _
        $region32: #{weights_predictor_mlp.1} parent=11 // pred_fallthru
          _
      $region12: #{weights_predictor_mlp.1} parent=5 // pred_fallthru
        _
      %p199 = scmp.lt.s32.totalorder %s12, 2
      // Predicated region
      $region33: #{weights_predictor_mlp.1} parent=5 // pred_check
        %p200 = pneg %p199
      $region34: #{weights_predictor_mlp.1} parent=5 // pred_check_branch
        %202 = sbr.rel (%p200) target = $region36
      $region35: #{weights_predictor_mlp.1} parent=5 // pred_region
        // Predicated region
        $region37: #{weights_predictor_mlp.1} parent=35 // pred_check
          %p203 = pneg %p32
        $region38: #{weights_predictor_mlp.1} parent=35 // pred_check_branch
          %205 = sbr.rel (%p203) target = $region40
        $region39: #{weights_predictor_mlp.1} parent=35 // pred_region
          %s206 = sand.u32 %s22, 1
          %s207 = sand.u32 %s22, 1
          %s208 = smul.addr %s207, 24
          %s209 = scalar_lea.vmem [#allocation2], %s208
          %s210 = smul.addr %s12, 4
          %s211 = scalar_lea.vmem %s0, %s210
          // Predicated region
          $region41: #{weights_predictor_mlp.1} parent=39 // pred_check
            _
          $region42: #{weights_predictor_mlp.1} parent=39 // pred_check_branch
            %213 = sbr.rel (0) target = $region44
          $region43: #{weights_predictor_mlp.1} parent=39 // pred_region
            // Predicated region
            $region45: #{weights_predictor_mlp.1} parent=43 // pred_check
              _
            $region46: #{weights_predictor_mlp.1} parent=43 // pred_check_branch
              %215 = sbr.rel target = $region48
            $region47: #{weights_predictor_mlp.1} parent=43 // pred_region
              // Predicated region
              $region60: #{weights_predictor_mlp.1} parent=47 // pred_check
                _
              $region61: #{weights_predictor_mlp.1} parent=47 // pred_check_branch
                %241 = sbr.rel (0) target = $region63
              $region62: #{weights_predictor_mlp.1} parent=47 // pred_region
                loop: start=0, step=1, limit=1
                $region64: #{weights_predictor_mlp.1} parent=62 // loop_pre_header
                  _
                $region65: #{weights_predictor_mlp.1} parent=62 // loop_header
                  %s243 = sphi 0, %s247
                  %p244 = scmp.ge.s32.totalorder %s243, 1
                  %s248 = sphi %s211, %s211
                  %s249 = sphi %s209, %s209
                $region66: #{weights_predictor_mlp.1} parent=62 // loop_header_branch
                  %246 = sbr.rel (%p244) target = $region70
                $region67: #{weights_predictor_mlp.1} parent=62 // loop_body
                  _
                $region68: #{weights_predictor_mlp.1} parent=62 // loop_footer
                  %s247 = sadd.s32 1, %s243
                $region69: #{weights_predictor_mlp.1} parent=62 // loop_footer_branch
                  %242 = sbr.rel target = $region65
                $region70: #{weights_predictor_mlp.1} parent=62 // loop_exit
                  _
                %s251 = ssub.s32 16, 1
                loop: start=0, step=1, limit=1
                $region71: #{weights_predictor_mlp.1} parent=62 // loop_pre_header
                  _
                $region72: #{weights_predictor_mlp.1} parent=62 // loop_header
                  %s253 = sphi 0, %s257
                  %p254 = scmp.ge.s32.totalorder %s253, 1
                  %s258 = sphi %s211, %s211
                  %s259 = sphi %s209, %s209
                $region73: #{weights_predictor_mlp.1} parent=62 // loop_header_branch
                  %256 = sbr.rel (%p254) target = $region77
                $region74: #{weights_predictor_mlp.1} parent=62 // loop_body
                  %v260 = vld [vmem:[%s258] sm:%s251]
                  %261 = vst [vmem:[%s259] sm:%s251] %v260
                  %v262 = vld [vmem:[%s258 + $0x8] sm:%s251]
                  %263 = vst [vmem:[%s259 + $0x4] sm:%s251] %v262
                  %v264 = vld [vmem:[%s258 + $0x10] sm:%s251]
                  %265 = vst [vmem:[%s259 + $0x8] sm:%s251] %v264
                  %v266 = vld [vmem:[%s258 + $0x18] sm:%s251]
                  %267 = vst [vmem:[%s259 + $0xc] sm:%s251] %v266
                  %v268 = vld [vmem:[%s258 + $0x20] sm:%s251]
                  %269 = vst [vmem:[%s259 + $0x10] sm:%s251] %v268
                  %v270 = vld [vmem:[%s258 + $0x28] sm:%s251]
                  %271 = vst [vmem:[%s259 + $0x14] sm:%s251] %v270
                $region75: #{weights_predictor_mlp.1} parent=62 // loop_footer
                  %s257 = sadd.s32 1, %s253
                $region76: #{weights_predictor_mlp.1} parent=62 // loop_footer_branch
                  %252 = sbr.rel target = $region72
                $region77: #{weights_predictor_mlp.1} parent=62 // loop_exit
                  _
              $region63: #{weights_predictor_mlp.1} parent=47 // pred_fallthru
                _
            $region48: #{weights_predictor_mlp.1} parent=43 // pred_fallthru
              _
            // Predicated region
            $region49: #{weights_predictor_mlp.1} parent=43 // pred_check
              _
            $region50: #{weights_predictor_mlp.1} parent=43 // pred_check_branch
              %217 = sbr.rel (0) target = $region52
            $region51: #{weights_predictor_mlp.1} parent=43 // pred_region
              %s219 = ssub.s32 16, 1
              loop: start=0, step=1, limit=1
              $region53: #{weights_predictor_mlp.1} parent=51 // loop_pre_header
                _
              $region54: #{weights_predictor_mlp.1} parent=51 // loop_header
                %s221 = sphi 0, %s225
                %p222 = scmp.ge.s32.totalorder %s221, 1
                %s226 = sphi %s211, %s211
                %s227 = sphi %s209, %s209
              $region55: #{weights_predictor_mlp.1} parent=51 // loop_header_branch
                %224 = sbr.rel (%p222) target = $region59
              $region56: #{weights_predictor_mlp.1} parent=51 // loop_body
                %v228 = vld [vmem:[%s226] sm:%s219]
                %229 = vst [vmem:[%s227] sm:%s219] %v228
                %v230 = vld [vmem:[%s226 + $0x8] sm:%s219]
                %231 = vst [vmem:[%s227 + $0x4] sm:%s219] %v230
                %v232 = vld [vmem:[%s226 + $0x10] sm:%s219]
                %233 = vst [vmem:[%s227 + $0x8] sm:%s219] %v232
                %v234 = vld [vmem:[%s226 + $0x18] sm:%s219]
                %235 = vst [vmem:[%s227 + $0xc] sm:%s219] %v234
                %v236 = vld [vmem:[%s226 + $0x20] sm:%s219]
                %237 = vst [vmem:[%s227 + $0x10] sm:%s219] %v236
                %v238 = vld [vmem:[%s226 + $0x28] sm:%s219]
                %239 = vst [vmem:[%s227 + $0x14] sm:%s219] %v238
              $region57: #{weights_predictor_mlp.1} parent=51 // loop_footer
                %s225 = sadd.s32 1, %s221
              $region58: #{weights_predictor_mlp.1} parent=51 // loop_footer_branch
                %220 = sbr.rel target = $region54
              $region59: #{weights_predictor_mlp.1} parent=51 // loop_exit
                _
            $region52: #{weights_predictor_mlp.1} parent=43 // pred_fallthru
              _
          $region44: #{weights_predictor_mlp.1} parent=39 // pred_fallthru
            _
          %272 = vnop
        $region40: #{weights_predictor_mlp.1} parent=35 // pred_fallthru
          _
      $region36: #{weights_predictor_mlp.1} parent=5 // pred_fallthru
        _
      %p273 = scmp.le.s32.totalorder 1, %s12
      %p274 = scmp.lt.s32.totalorder %s12, 3
      %p275 = pnand %p273, %p274
      %p276 = pneg %p275
      // Predicated region
      $region78: #{weights_predictor_mlp.1} parent=5 // pred_check
        _
      $region79: #{weights_predictor_mlp.1} parent=5 // pred_check_branch
        %278 = sbr.rel (%p275) target = $region81
      $region80: #{weights_predictor_mlp.1} parent=5 // pred_region
        %s279 = ssub.s32 %s12, 1
        %s280 = sand.u32 %s25, 1
        %s281 = sand.u32 %s25, 1
        %s282 = smul.addr %s281, 24
        %s283 = scalar_lea.vmem [#allocation2], %s282
        // Predicated region
        $region82: #{weights_predictor_mlp.1} parent=80 // pred_check
          %p284 = pneg %p38
        $region83: #{weights_predictor_mlp.1} parent=80 // pred_check_branch
          %286 = sbr.rel (%p284) target = $region85
        $region84: #{weights_predictor_mlp.1} parent=80 // pred_region
          _
        $region85: #{weights_predictor_mlp.1} parent=80 // pred_fallthru
          _
        %s287 = sand.u32 %s25, 1
        %s288 = sand.u32 %s25, 1
        %s289 = smul.addr %s288, 24
        %s290 = scalar_lea.vmem [#allocation2], %s289
        %p291 = pneg %p38
        %p292 = pneg %p35
        %p293 = pneg %p59
        %p294 = pneg %p56
        %p295 = pneg %p80
        %p296 = pneg %p77
        %p297 = pneg %p101
        %p298 = pneg %p98
        %p299 = pneg %p122
        %p300 = pneg %p119
        %p301 = pneg %p143
        %p302 = pneg %p140
        %p303 = pneg %p169
        %p304 = pneg %p166
        %p305 = scmp.lt.s32.totalorder %s17, 1
        %s306 = scalar_select %p305, %s17, 1
        %s307 = scalar_lea.vmem %s6, %s306
        %p308 = scmp.lt.s32.totalorder %s17, 1
        %s309 = scalar_select %p308, %s17, 1
        %s310 = scalar_lea.vmem %s6, %s309
        %v312 = vld [vmem:[%s283] sm:$0xf]
        %v313 = vld [vmem:[%s283 + $0x4] sm:$0xf]
        %v314 = vld [vmem:[%s283 + $0x8] sm:$0xf]
        %v315 = vld [vmem:[%s283 + $0xc] sm:$0xf]
        %v316 = vld [vmem:[%s283 + $0x10] sm:$0xf]
        %v317 = vld [vmem:[%s283 + $0x14] sm:$0xf]
        %v318 = vld [vmem:[%s1] sm:$0xf]
        %v319 = vld [vmem:[%s1 + $0x4] sm:$0xf]
        %v320 = vld [vmem:[%s1 + $0x8] sm:$0xf]
        %v321 = vld [vmem:[%s1 + $0xc] sm:$0xf]
        %v322 = vld [vmem:[%s1 + $0x10] sm:$0xf]
        %v323 = vld [vmem:[%s1 + $0x14] sm:$0xf]
        %v324 = vld [vmem:[%s1 + $0x18] sm:$0xf]
        %v325 = vld [vmem:[%s1 + $0x1c] sm:$0xf]
        %v326 = vld [vmem:[%s2] sm:$0xff]
        %v327 = vld [vmem:[%s2 + $0x8] sm:$0xff]
        %v328 = vld [vmem:[%s2 + $0x10] sm:$0xff]
        %v329 = vld [vmem:[%s2 + $0x18] sm:$0xff]
        %v330 = vld [vmem:[%s2 + $0x20] sm:$0xff]
        %v331 = vld [vmem:[%s2 + $0x28] sm:$0xff]
        %v332 = vld [vmem:[%s2 + $0x30] sm:$0xff]
        %v333 = vld [vmem:[%s2 + $0x38] sm:$0xff]
        %335 = vset.pattern.permute.xlu0 0
        %336 = vperm.xlu0 %335, %v326
        %v337 = vpop.permute.xlu0 %336
        %340 = vset.pattern.permute.xlu0 0
        %341 = vperm.xlu0 %340, %v327
        %v342 = vpop.permute.xlu0 %341
        %345 = vset.pattern.permute.xlu0 0
        %346 = vperm.xlu0 %345, %v328
        %v347 = vpop.permute.xlu0 %346
        %350 = vset.pattern.permute.xlu0 0
        %351 = vperm.xlu0 %350, %v329
        %v352 = vpop.permute.xlu0 %351
        %355 = vset.pattern.permute.xlu0 0
        %356 = vperm.xlu0 %355, %v330
        %v357 = vpop.permute.xlu0 %356
        %360 = vset.pattern.permute.xlu0 0
        %361 = vperm.xlu0 %360, %v331
        %v362 = vpop.permute.xlu0 %361
        %365 = vset.pattern.permute.xlu0 0
        %366 = vperm.xlu0 %365, %v332
        %v367 = vpop.permute.xlu0 %366
        %370 = vset.pattern.permute.xlu0 0
        %371 = vperm.xlu0 %370, %v333
        %v372 = vpop.permute.xlu0 %371
        %v382 = vunpack.c.l.b16 %v318
        %v383 = vunpack.c.l.b16 %v319
        %v384 = vunpack.c.l.b16 %v320
        %v385 = vunpack.c.l.b16 %v321
        %v386 = vunpack.c.l.b16 %v322
        %v387 = vunpack.c.l.b16 %v323
        %v388 = vunpack.c.l.b16 %v324
        %v389 = vunpack.c.l.b16 %v325
        %v390 = vpack.c.b16 %v383, %v382
        %v391 = vpack.c.b16 %v385, %v384
        %v392 = vpack.c.b16 %v387, %v386
        %v393 = vpack.c.b16 %v389, %v388
        %v400 = vunpack.c.l.b16 %v312
        %v401 = vunpack.c.l.b16 %v313
        %v402 = vunpack.c.l.b16 %v314
        %v403 = vunpack.c.l.b16 %v315
        %v404 = vunpack.c.l.b16 %v316
        %v405 = vunpack.c.l.b16 %v317
        %v406 = vpack.c.b16 %v401, %v400
        %v407 = vpack.c.b16 %v403, %v402
        %v408 = vpack.c.b16 %v405, %v404
        %vm412 = vcmask 392192
        %v414 = vsel %vm412, %v390, 0
        %v417 = vsel %vm412, %v391, 0
        %v420 = vsel %vm412, %v392, 0
        %v423 = vsel %vm412, %v393, 0
        %425 = vmatprep.subr.bf16.mxu0 0
        %426 = vmatpush1.bf16.msra.mxu0 0
        %427 = vmatprep.subr.bf16.mxu0 0
        %428 = vmatpush1.bf16.msra.mxu0 0
        %429 = vmatprep.subr.bf16.mxu0 0
        %430 = vmatpush1.bf16.msra.mxu0 0
        %431 = vmatprep.subr.bf16.mxu0 0
        %432 = vmatpush1.bf16.msra.mxu0 0
        %433 = vmatprep.subr.bf16.mxu0 0
        %434 = vmatpush1.bf16.msra.mxu0 0
        %435 = vmatprep.subr.bf16.mxu0 0
        %436 = vmatpush1.bf16.msra.mxu0 %v408
        %437 = vmatprep.subr.bf16.mxu0 0
        %438 = vmatpush1.bf16.msra.mxu0 %v407
        %439 = vmatprep.subr.bf16.mxu0 0
        %440 = vmatpush1.bf16.msra.mxu0 %v406
        %441 = vmatprep.subr.bf16.mxu0 0
        %442 = vmatpush2.bf16.msra.mxu0 0
        %443 = vmatprep.subr.bf16.mxu0 0
        %444 = vmatpush2.bf16.msra.mxu0 0
        %445 = vmatprep.subr.bf16.mxu0 0
        %446 = vmatpush2.bf16.msra.mxu0 0
        %447 = vmatprep.subr.bf16.mxu0 0
        %448 = vmatpush2.bf16.msra.mxu0 0
        %449 = vmatprep.subr.bf16.mxu0 0
        %450 = vmatpush2.bf16.msra.mxu0 0
        %451 = vmatprep.subr.bf16.mxu0 0
        %452 = vmatpush2.bf16.msra.mxu0 0
        %453 = vmatprep.subr.bf16.mxu0 0
        %454 = vmatpush2.bf16.msra.mxu0 0
        %455 = vmatprep.subr.bf16.mxu0 0
        %456 = vmatpush2.bf16.msra.mxu0 0
        %457 = vmatprep.mubr.bf16.mxu0 0
        %458 = vmatmul.mubr.bf16.gmra.mxu0 %v414
        %v459 = vpop.f32.mrf.mxu0
        %v460 = vadd.f32 %v337, %v459
        %v461 = vpop.f32.mrf.mxu0
        %v462 = vpop.f32.mrf.mxu0
        %v463 = vadd.f32 %v342, %v462
        %v464 = vpop.f32.mrf.mxu0
        %465 = vmatprep.mubr.bf16.mxu0 0
        %466 = vmatmul.mubr.bf16.gmra.mxu0 %v417
        %v467 = vpop.f32.mrf.mxu0
        %v468 = vadd.f32 %v347, %v467
        %v469 = vpop.f32.mrf.mxu0
        %v470 = vpop.f32.mrf.mxu0
        %v471 = vadd.f32 %v352, %v470
        %v472 = vpop.f32.mrf.mxu0
        %473 = vmatprep.mubr.bf16.mxu0 0
        %474 = vmatmul.mubr.bf16.gmra.mxu0 %v420
        %v475 = vpop.f32.mrf.mxu0
        %v476 = vadd.f32 %v357, %v475
        %v477 = vpop.f32.mrf.mxu0
        %v478 = vpop.f32.mrf.mxu0
        %v479 = vadd.f32 %v362, %v478
        %v480 = vpop.f32.mrf.mxu0
        %481 = vmatprep.mubr.bf16.mxu0 0
        %482 = vmatmul.mubr.bf16.gmra.mxu0 %v423
        %v483 = vpop.f32.mrf.mxu0
        %v484 = vadd.f32 %v367, %v483
        %v485 = vpop.f32.mrf.mxu0
        %v486 = vpop.f32.mrf.mxu0
        %v487 = vadd.f32 %v372, %v486
        %v488 = vpop.f32.mrf.mxu0
        %489 = vdwg.mxu0
        %v490 = vadd.f32 %v460, %v463
        %v491 = vadd.f32 %v490, %v468
        %v492 = vadd.f32 %v491, %v471
        %v493 = vadd.f32 %v492, %v476
        %v494 = vadd.f32 %v493, %v479
        %v495 = vadd.f32 %v494, %v484
        %v496 = vadd.f32 %v495, %v487
        %v497 = vrot.slane %v496, 4
        %v498 = vadd.f32 %v496, %v497
        %v499 = vrot.slane %v498, 2
        %v500 = vadd.f32 %v498, %v499
        %v501 = vrot.slane %v500, 1
        %v502 = vadd.f32 %v500, %v501
        %v503 = vrcp.pop 64.0
        %v504 = vmul.f32 %v502, %v503
        %v505 = vsub.f32 %v460, %v504
        %v506 = vsub.f32 %v463, %v504
        %v507 = vsub.f32 %v468, %v504
        %v508 = vsub.f32 %v471, %v504
        %v509 = vsub.f32 %v476, %v504
        %v510 = vsub.f32 %v479, %v504
        %v511 = vsub.f32 %v484, %v504
        %v512 = vsub.f32 %v487, %v504
        %v513 = vmul.f32 %v505, %v505
        %v514 = vmul.f32 %v506, %v506
        %v515 = vmul.f32 %v507, %v507
        %v516 = vmul.f32 %v508, %v508
        %v517 = vmul.f32 %v509, %v509
        %v518 = vmul.f32 %v510, %v510
        %v519 = vmul.f32 %v511, %v511
        %v520 = vmul.f32 %v512, %v512
        %v521 = vadd.f32 %v513, %v514
        %v522 = vadd.f32 %v521, %v515
        %v523 = vadd.f32 %v522, %v516
        %v524 = vadd.f32 %v523, %v517
        %v525 = vadd.f32 %v524, %v518
        %v526 = vadd.f32 %v525, %v519
        %v527 = vadd.f32 %v526, %v520
        %v528 = vrot.slane %v527, 4
        %v529 = vadd.f32 %v527, %v528
        %v530 = vrot.slane %v529, 2
        %v531 = vadd.f32 %v529, %v530
        %v532 = vrot.slane %v531, 1
        %v533 = vadd.f32 %v531, %v532
        %v534 = vmul.f32 %v533, %v503
        %v535 = vadd.f32 %v534, 1e-05
        %v536 = vrsqrt.pop %v535
        %v537 = vmul.f32 %v505, %v536
        %v538 = vmul.f32 %v506, %v536
        %v539 = vmul.f32 %v507, %v536
        %v540 = vmul.f32 %v508, %v536
        %v541 = vmul.f32 %v509, %v536
        %v542 = vmul.f32 %v510, %v536
        %v543 = vmul.f32 %v511, %v536
        %v544 = vmul.f32 %v512, %v536
        %545 = vset.pattern.permute.xlu0 1
        %546 = vperm.xlu0 %545, %v326
        %v547 = vpop.permute.xlu0 %546
        %549 = vset.pattern.permute.xlu0 1
        %550 = vperm.xlu0 %549, %v327
        %v551 = vpop.permute.xlu0 %550
        %553 = vset.pattern.permute.xlu0 1
        %554 = vperm.xlu0 %553, %v328
        %v555 = vpop.permute.xlu0 %554
        %557 = vset.pattern.permute.xlu0 1
        %558 = vperm.xlu0 %557, %v329
        %v559 = vpop.permute.xlu0 %558
        %561 = vset.pattern.permute.xlu0 1
        %562 = vperm.xlu0 %561, %v330
        %v563 = vpop.permute.xlu0 %562
        %565 = vset.pattern.permute.xlu0 1
        %566 = vperm.xlu0 %565, %v331
        %v567 = vpop.permute.xlu0 %566
        %569 = vset.pattern.permute.xlu0 1
        %570 = vperm.xlu0 %569, %v332
        %v571 = vpop.permute.xlu0 %570
        %573 = vset.pattern.permute.xlu0 1
        %574 = vperm.xlu0 %573, %v333
        %v575 = vpop.permute.xlu0 %574
        %v577 = vmul.f32 %v537, %v547
        %v578 = vmul.f32 %v538, %v551
        %v579 = vmul.f32 %v539, %v555
        %v580 = vmul.f32 %v540, %v559
        %v581 = vmul.f32 %v541, %v563
        %v582 = vmul.f32 %v542, %v567
        %v583 = vmul.f32 %v543, %v571
        %v584 = vmul.f32 %v544, %v575
        %585 = vset.pattern.permute.xlu0 2
        %586 = vperm.xlu0 %585, %v326
        %v587 = vpop.permute.xlu0 %586
        %589 = vset.pattern.permute.xlu0 2
        %590 = vperm.xlu0 %589, %v327
        %v591 = vpop.permute.xlu0 %590
        %593 = vset.pattern.permute.xlu0 2
        %594 = vperm.xlu0 %593, %v328
        %v595 = vpop.permute.xlu0 %594
        %597 = vset.pattern.permute.xlu0 2
        %598 = vperm.xlu0 %597, %v329
        %v599 = vpop.permute.xlu0 %598
        %601 = vset.pattern.permute.xlu0 2
        %602 = vperm.xlu0 %601, %v330
        %v603 = vpop.permute.xlu0 %602
        %605 = vset.pattern.permute.xlu0 2
        %606 = vperm.xlu0 %605, %v331
        %v607 = vpop.permute.xlu0 %606
        %609 = vset.pattern.permute.xlu0 2
        %610 = vperm.xlu0 %609, %v332
        %v611 = vpop.permute.xlu0 %610
        %613 = vset.pattern.permute.xlu0 2
        %614 = vperm.xlu0 %613, %v333
        %v615 = vpop.permute.xlu0 %614
        %v617 = vadd.f32 %v577, %v587
        %v618 = vadd.f32 %v578, %v591
        %v619 = vadd.f32 %v579, %v595
        %v620 = vadd.f32 %v580, %v599
        %v621 = vadd.f32 %v581, %v603
        %v622 = vadd.f32 %v582, %v607
        %v623 = vadd.f32 %v583, %v611
        %v624 = vadd.f32 %v584, %v615
        %v625 = vmax.f32 %v617, 0.0
        %v626 = vmax.f32 %v618, 0.0
        %v627 = vmax.f32 %v619, 0.0
        %v628 = vmax.f32 %v620, 0.0
        %v629 = vmax.f32 %v621, 0.0
        %v630 = vmax.f32 %v622, 0.0
        %v631 = vmax.f32 %v623, 0.0
        %v632 = vmax.f32 %v624, 0.0
        %v633 = vld [vmem:[%s3] sm:$0xff]
        %v634 = vld [vmem:[%s3 + $0x8] sm:$0xff]
        %v635 = vld [vmem:[%s3 + $0x10] sm:$0xff]
        %v636 = vld [vmem:[%s3 + $0x18] sm:$0xff]
        %v637 = vld [vmem:[%s4] sm:$0xff]
        %v638 = vld [vmem:[%s4 + $0x8] sm:$0xff]
        %v639 = vld [vmem:[%s4 + $0x10] sm:$0xff]
        %v640 = vld [vmem:[%s4 + $0x18] sm:$0xff]
        %642 = vset.pattern.permute.xlu0 0
        %643 = vperm.xlu0 %642, %v637
        %v644 = vpop.permute.xlu0 %643
        %647 = vset.pattern.permute.xlu0 0
        %648 = vperm.xlu0 %647, %v638
        %v649 = vpop.permute.xlu0 %648
        %652 = vset.pattern.permute.xlu0 0
        %653 = vperm.xlu0 %652, %v639
        %v654 = vpop.permute.xlu0 %653
        %657 = vset.pattern.permute.xlu0 0
        %658 = vperm.xlu0 %657, %v640
        %v659 = vpop.permute.xlu0 %658
        %vm661 = vcmask 523264
        %v663 = vsel %vm661, %v633, 0
        %v666 = vsel %vm661, %v634, 0
        %v669 = vsel %vm661, %v635, 0
        %v672 = vsel %vm661, %v636, 0
        %674 = vmatprep.subr.mxu0 0.0
        %675 = vmatpush1.msra.mxu0 0.0
        %676 = vmatprep.subr.mxu0 0.0
        %677 = vmatpush1.msra.mxu0 0.0
        %678 = vmatprep.subr.mxu0 0.0
        %679 = vmatpush1.msra.mxu0 0.0
        %680 = vmatprep.subr.mxu0 0.0
        %681 = vmatpush1.msra.mxu0 0.0
        %682 = vmatprep.subr.mxu0 0.0
        %683 = vmatpush1.msra.mxu0 0.0
        %684 = vmatprep.subr.mxu0 0.0
        %685 = vmatpush1.msra.mxu0 0.0
        %686 = vmatprep.subr.mxu0 0.0
        %687 = vmatpush1.msra.mxu0 0.0
        %688 = vmatprep.subr.mxu0 0.0
        %689 = vmatpush1.msra.mxu0 0.0
        %690 = vmatprep.subr.mxu0 0.0
        %691 = vmatpush1.msra.mxu0 %v632
        %692 = vmatprep.subr.mxu0 0.0
        %693 = vmatpush1.msra.mxu0 %v631
        %694 = vmatprep.subr.mxu0 0.0
        %695 = vmatpush1.msra.mxu0 %v630
        %696 = vmatprep.subr.mxu0 0.0
        %697 = vmatpush1.msra.mxu0 %v629
        %698 = vmatprep.subr.mxu0 0.0
        %699 = vmatpush1.msra.mxu0 %v628
        %700 = vmatprep.subr.mxu0 0.0
        %701 = vmatpush1.msra.mxu0 %v627
        %702 = vmatprep.subr.mxu0 0.0
        %703 = vmatpush1.msra.mxu0 %v626
        %704 = vmatprep.subr.mxu0 0.0
        %705 = vmatpush1.msra.mxu0 %v625
        %706 = vmatprep.subr.mxu0 0.0
        %707 = vmatpush2.msra.mxu0 0.0
        %708 = vmatprep.subr.mxu0 0.0
        %709 = vmatpush2.msra.mxu0 0.0
        %710 = vmatprep.subr.mxu0 0.0
        %711 = vmatpush2.msra.mxu0 0.0
        %712 = vmatprep.subr.mxu0 0.0
        %713 = vmatpush2.msra.mxu0 0.0
        %714 = vmatprep.subr.mxu0 0.0
        %715 = vmatpush2.msra.mxu0 0.0
        %716 = vmatprep.subr.mxu0 0.0
        %717 = vmatpush2.msra.mxu0 0.0
        %718 = vmatprep.subr.mxu0 0.0
        %719 = vmatpush2.msra.mxu0 0.0
        %720 = vmatprep.subr.mxu0 0.0
        %721 = vmatpush2.msra.mxu0 0.0
        %722 = vmatprep.subr.mxu0 0.0
        %723 = vmatpush2.msra.mxu0 0.0
        %724 = vmatprep.subr.mxu0 0.0
        %725 = vmatpush2.msra.mxu0 0.0
        %726 = vmatprep.subr.mxu0 0.0
        %727 = vmatpush2.msra.mxu0 0.0
        %728 = vmatprep.subr.mxu0 0.0
        %729 = vmatpush2.msra.mxu0 0.0
        %730 = vmatprep.subr.mxu0 0.0
        %731 = vmatpush2.msra.mxu0 0.0
        %732 = vmatprep.subr.mxu0 0.0
        %733 = vmatpush2.msra.mxu0 0.0
        %734 = vmatprep.subr.mxu0 0.0
        %735 = vmatpush2.msra.mxu0 0.0
        %736 = vmatprep.subr.mxu0 0.0
        %737 = vmatpush2.msra.mxu0 0.0
        %738 = vmatprep.mubr.f32.mxu0 0.0
        %739 = vmatmul.mubr.f32.gmra.mxu0 %v663
        %v740 = vpop.f32.mrf.mxu0
        %v741 = vadd.f32 %v644, %v740
        %v742 = vpop.f32.mrf.mxu0
        %743 = vmatprep.mubr.f32.mxu0 0.0
        %744 = vmatmul.mubr.f32.gmra.mxu0 %v666
        %v745 = vpop.f32.mrf.mxu0
        %v746 = vadd.f32 %v649, %v745
        %v747 = vpop.f32.mrf.mxu0
        %748 = vmatprep.mubr.f32.mxu0 0.0
        %749 = vmatmul.mubr.f32.gmra.mxu0 %v669
        %v750 = vpop.f32.mrf.mxu0
        %v751 = vadd.f32 %v654, %v750
        %v752 = vpop.f32.mrf.mxu0
        %753 = vmatprep.mubr.f32.mxu0 0.0
        %754 = vmatmul.mubr.f32.gmra.mxu0 %v672
        %v755 = vpop.f32.mrf.mxu0
        %v756 = vadd.f32 %v659, %v755
        %v757 = vpop.f32.mrf.mxu0
        %758 = vdwg.mxu0
        %v759 = vadd.f32 %v741, %v746
        %v760 = vadd.f32 %v759, %v751
        %v761 = vadd.f32 %v760, %v756
        %v762 = vrot.slane %v761, 4
        %v763 = vadd.f32 %v761, %v762
        %v764 = vrot.slane %v763, 2
        %v765 = vadd.f32 %v763, %v764
        %v766 = vrot.slane %v765, 1
        %v767 = vadd.f32 %v765, %v766
        %v768 = vrcp.pop 32.0
        %v769 = vmul.f32 %v767, %v768
        %v770 = vsub.f32 %v741, %v769
        %v771 = vsub.f32 %v746, %v769
        %v772 = vsub.f32 %v751, %v769
        %v773 = vsub.f32 %v756, %v769
        %v774 = vmul.f32 %v770, %v770
        %v775 = vmul.f32 %v771, %v771
        %v776 = vmul.f32 %v772, %v772
        %v777 = vmul.f32 %v773, %v773
        %v778 = vadd.f32 %v774, %v775
        %v779 = vadd.f32 %v778, %v776
        %v780 = vadd.f32 %v779, %v777
        %v781 = vrot.slane %v780, 4
        %v782 = vadd.f32 %v780, %v781
        %v783 = vrot.slane %v782, 2
        %v784 = vadd.f32 %v782, %v783
        %v785 = vrot.slane %v784, 1
        %v786 = vadd.f32 %v784, %v785
        %v787 = vmul.f32 %v786, %v768
        %v788 = vadd.f32 %v787, 1e-05
        %v789 = vrsqrt.pop %v788
        %v790 = vmul.f32 %v770, %v789
        %v791 = vmul.f32 %v771, %v789
        %v792 = vmul.f32 %v772, %v789
        %v793 = vmul.f32 %v773, %v789
        %794 = vset.pattern.permute.xlu0 1
        %795 = vperm.xlu0 %794, %v637
        %v796 = vpop.permute.xlu0 %795
        %798 = vset.pattern.permute.xlu0 1
        %799 = vperm.xlu0 %798, %v638
        %v800 = vpop.permute.xlu0 %799
        %802 = vset.pattern.permute.xlu0 1
        %803 = vperm.xlu0 %802, %v639
        %v804 = vpop.permute.xlu0 %803
        %806 = vset.pattern.permute.xlu0 1
        %807 = vperm.xlu0 %806, %v640
        %v808 = vpop.permute.xlu0 %807
        %v810 = vmul.f32 %v790, %v796
        %v811 = vmul.f32 %v791, %v800
        %v812 = vmul.f32 %v792, %v804
        %v813 = vmul.f32 %v793, %v808
        %814 = vset.pattern.permute.xlu0 2
        %815 = vperm.xlu0 %814, %v637
        %v816 = vpop.permute.xlu0 %815
        %818 = vset.pattern.permute.xlu0 2
        %819 = vperm.xlu0 %818, %v638
        %v820 = vpop.permute.xlu0 %819
        %822 = vset.pattern.permute.xlu0 2
        %823 = vperm.xlu0 %822, %v639
        %v824 = vpop.permute.xlu0 %823
        %826 = vset.pattern.permute.xlu0 2
        %827 = vperm.xlu0 %826, %v640
        %v828 = vpop.permute.xlu0 %827
        %v830 = vadd.f32 %v810, %v816
        %v831 = vadd.f32 %v811, %v820
        %v832 = vadd.f32 %v812, %v824
        %v833 = vadd.f32 %v813, %v828
        %v834 = vmax.f32 %v830, 0.0
        %v835 = vmax.f32 %v831, 0.0
        %v836 = vmax.f32 %v832, 0.0
        %v837 = vmax.f32 %v833, 0.0
        %v838 = vld [vmem:[%s5] sm:$0xff]
        %v839 = vld [vmem:[%s5 + $0x8] sm:$0xff]
        %v840 = vld [vmem:[%s5 + $0x10] sm:$0xff]
        %v841 = vld [vmem:[%s5 + $0x18] sm:$0xff]
        %843 = vset.pattern.permute.xlu0 0
        %844 = vperm.xlu0 %843, %v838
        %v845 = vpop.permute.xlu0 %844
        %848 = vset.pattern.permute.xlu0 0
        %849 = vperm.xlu0 %848, %v839
        %v850 = vpop.permute.xlu0 %849
        %853 = vset.pattern.permute.xlu0 0
        %854 = vperm.xlu0 %853, %v840
        %v855 = vpop.permute.xlu0 %854
        %858 = vset.pattern.permute.xlu0 0
        %859 = vperm.xlu0 %858, %v841
        %v860 = vpop.permute.xlu0 %859
        %v862 = vmul.f32 %v834, %v845
        %v863 = vmul.f32 %v835, %v850
        %v864 = vmul.f32 %v836, %v855
        %v865 = vmul.f32 %v837, %v860
        %v866 = vadd.f32 %v862, %v863
        %v867 = vadd.f32 %v866, %v864
        %v868 = vadd.f32 %v867, %v865
        %v869 = vrot.slane %v868, 4
        %v870 = vadd.f32 %v868, %v869
        %v871 = vrot.slane %v870, 2
        %v872 = vadd.f32 %v870, %v871
        %v873 = vrot.slane %v872, 1
        %v874 = vadd.f32 %v872, %v873
        %875 = vset.pattern.permute.xlu0 1
        %876 = vperm.xlu0 %875, %v838
        %v877 = vpop.permute.xlu0 %876
        %v879 = vadd.f32 %v874, %v877
        %v880 = vxor.u32 %v879, 2147483648
        %v881 = vmul.f32 %v880, 1.442695
        %v882 = vpow.pop %v881
        %v883 = vadd.f32 %v882, 1.0
        %v884 = vrcp.pop %v883
        %v885 = vmul.f32 1.0, %v884
        %886 = vst [vmem:[%s310] sm:$0x1] %v885
        %p887 = scmp.lt.s32.totalorder %s17, 1
        %s888 = scalar_select %p887, %s17, 1
        %s889 = scalar_lea.vmem %s6, %s888
        // Predicated region
        $region86: #{weights_predictor_mlp.1} parent=80 // pred_check
          %p890 = pneg %p166
        $region87: #{weights_predictor_mlp.1} parent=80 // pred_check_branch
          %892 = sbr.rel (%p890) target = $region89
        $region88: #{weights_predictor_mlp.1} parent=80 // pred_region
          _
        $region89: #{weights_predictor_mlp.1} parent=80 // pred_fallthru
          _
      $region81: #{weights_predictor_mlp.1} parent=5 // pred_fallthru
        _
      %p893 = scmp.le.s32.totalorder 2, %s12
      // Predicated region
      $region90: #{weights_predictor_mlp.1} parent=5 // pred_check
        %p894 = pneg %p893
      $region91: #{weights_predictor_mlp.1} parent=5 // pred_check_branch
        %896 = sbr.rel (%p894) target = $region93
      $region92: #{weights_predictor_mlp.1} parent=5 // pred_region
        %s897 = ssub.s32 %s12, 2
        // Predicated region
        $region94: #{weights_predictor_mlp.1} parent=92 // pred_check
          %p898 = pneg %p172
        $region95: #{weights_predictor_mlp.1} parent=92 // pred_check_branch
          %900 = sbr.rel (%p898) target = $region97
        $region96: #{weights_predictor_mlp.1} parent=92 // pred_region
          %p901 = scmp.lt.s32.totalorder %s18, 1
          %s902 = scalar_select %p901, %s18, 1
          %s903 = scalar_lea.vmem %s6, %s902
        $region97: #{weights_predictor_mlp.1} parent=92 // pred_fallthru
          _
      $region93: #{weights_predictor_mlp.1} parent=5 // pred_fallthru
        _
    $region6: #{weights_predictor_mlp.1} parent=1 // loop_footer
      %s16 = sadd.s32 1, %s12
    $region7: #{weights_predictor_mlp.1} parent=1 // loop_footer_branch
      %11 = sbr.rel target = $region3
    $region8: #{weights_predictor_mlp.1} parent=1 // loop_exit
      _

</llo_original>
